<compile_context>
chip_gen: v7x
topology: tpu7x:2x2x1
jax: 0.10.0
libtpu: 0.0.40
codegen_flags: <defaults>
</compile_context>

<pallas_src>
import functools

import jax
import jax.numpy as jnp
from jax.experimental import pallas as pl
from jax.experimental.pallas import tpu as pltpu


def _attention_pooling_kernel(h_ref, q_ref, w_ref, o_ref, *, n_rows, hidden_size,
                              valid_rows):
    """One batch tile.

    h_ref : (TB, L*H)   CLS stack in torch `.view` memory order, native dtype
    q_ref : (1, H)      attention query (resident, single-buffered)
    w_ref : (H, O_pad)  projection weights (resident, single-buffered)
    o_ref : (TB, O_pad) f32 output (lane-dense)
    """
    tb = h_ref.shape[0]
    H = hidden_size
    q = q_ref[...].astype(jnp.float32)                                    # (1, H)

    # ---- pass 1: scores[b, l] = <h[b, l, :], q> ; one (TB, H) f32 slice live at a time.
    # (column slices are free when H is a multiple of 128 lanes)
    scores = []
    for l in range(n_rows):
        h_l = h_ref[:, l * H:(l + 1) * H].astype(jnp.float32)             # (TB, H)
        scores.append(jnp.sum(h_l * q, axis=-1, keepdims=True))           # (TB, 1)

    # Row-validity mask for a partial last batch tile: reads past the end of h are
    # undefined, so keep them out of exp() and the MXU (their outputs are discarded).
    ok = None
    if valid_rows is not None:
        row = pl.program_id(0) * tb + jax.lax.broadcasted_iota(jnp.int32, (tb, 1), 0)
        ok = row < valid_rows
        scores = [jnp.where(ok, s, 0.0) for s in scores]

    # ---- softmax over the L scores, kept as (TB, 1) columns (no (TB, L, H) temporaries,
    # no narrow-lane concatenation).
    m = scores[0]
    for s in scores[1:]:
        m = jnp.maximum(m, s)
    exps = [jnp.exp(s - m) for s in scores]
    denom = exps[0]
    for e in exps[1:]:
        denom = denom + e
    inv = pl.reciprocal(denom, approx=True)           # EUP slot; ~free while HBM-bound
    weights = [e * inv for e in exps]                 # (TB, 1) each

    # ---- pass 2: pooled[b, :] = sum_l weights[b, l] * h[b, l, :]  (f32 accumulation).
    pooled = jnp.zeros((tb, H), dtype=jnp.float32)
    for l in range(n_rows):
        h_l = h_ref[:, l * H:(l + 1) * H].astype(jnp.float32)
        pooled = pooled + weights[l] * h_l

    if ok is not None:
        pooled = jnp.where(ok, pooled, 0.0)           # no NaN/inf garbage into the MXU

    # ---- final projection on the MXU in the weight's native dtype (single-pass for
    # bf16 weights), f32 accumulation.  O padded to x128 -> unmasked lane-dense stores.
    o_ref[...] = jnp.dot(pooled.astype(w_ref.dtype), w_ref[...],
                         preferred_element_type=jnp.float32)


def attention_pooling(hidden_states, q, w_h, *, tile_b: int = 512,
                      vmem_limit_bytes: int | None = None):
    """AttentionPooling forward.  CLS extraction and the torch `.view` reshape stay in
    the wrapper (native dtype, no host upcast); the hot path is a batch-tiled Pallas
    kernel over a (B, L*H) flattening of the CLS stack.

    Per-generation sizing:
      * v5e / v6e: 128 MiB physical VMEM, 16 / 32 MiB default scoped limit — pass
        vmem_limit_bytes=64<<20 to let the auto-sizer keep tile_b at 256-512 for large
        L*H (per-grid-step overhead amortizes better with bigger tiles).
      * v7x: 64 MiB physical VMEM, 32 MiB default scoped limit — keep the default
        budget; the auto-sizer also keeps >= 2 batch tiles so the "parallel" grid axis
        can shard across the two TensorCores.
    """
    n_layers = len(hidden_states)
    hidden_size = hidden_states[0].shape[-1]
    n_rows = n_layers - 1                                   # L
    out_size = w_h.shape[1]

    # TODO(synk): fuse the CLS gather into the kernel (memory_space=pl.ANY + per-row DMA)
    # to drop this stacked HBM intermediate.  The literal torch .view(-1, L, H) maps tile
    # row b, layer l to hidden_states[1 + (b*L+l)//B][(b*L+l) % B, 0, :] — a per-row,
    # cross-tensor gather a static BlockSpec index_map cannot express.  If the intended
    # semantics were the (B, L) permute, L pre-sliced (B, H) inputs with per-layer
    # BlockSpecs would fuse cleanly; kept faithful to the source module instead.
    h = jnp.stack([hidden_states[i][:, 0, :] for i in range(1, n_layers)], axis=0)  # (L,B,H)
    batch = h.shape[1]
    # Exact torch .view(-1, L, H) semantics, flattened to 2-D (free row-major reshape):
    #   h2d[b, l*H:(l+1)*H] == h.view(-1, L, H)[b, l, :]
    h2d = h.reshape(batch, n_rows * hidden_size)                                     # (B, L*H)

    # Lane-dense output: pad out_size up to a multiple of 128 (sliced off afterwards).
    # The padding depends only on w_h, so it is hoisted/CSE'd under jit; pre-pad once if
    # calling eagerly in a loop.
    o_pad = -(-out_size // 128) * 128
    w_hp = w_h if o_pad == out_size else jnp.pad(w_h, ((0, 0), (0, o_pad - out_size)))

    # ---- batch-tile sizing --------------------------------------------------------
    itemsize = h2d.dtype.itemsize
    # Per batch row: double-buffered h block + f32 working slices + double-buffered f32 out.
    per_row = 2 * n_rows * hidden_size * itemsize + 2 * 4 * hidden_size + 2 * 4 * o_pad
    const_bytes = hidden_size * o_pad * w_hp.dtype.itemsize + hidden_size * q.dtype.itemsize
    budget = (12 << 20) if vmem_limit_bytes is None else (int(vmem_limit_bytes) * 3) // 4
    avail = max(budget - const_bytes, per_row * 8)

    tb = max(8, int(tile_b))
    while tb > 8 and tb * per_row > avail:            # fit the VMEM budget
        tb //= 2
    while tb > 8 and batch <= tb and batch > 8:       # keep >= 2 grid steps (v7x megacore)
        tb //= 2
    if batch <= tb:
        tb = batch                                    # single full-extent block
    elif tb % 8:
        tb = max(8, (tb // 8) * 8)                    # blocked sublane dim must be x8
    grid = (pl.cdiv(batch, tb),)
    valid_rows = batch if batch % tb else None        # mask only a partial last tile

    kernel = functools.partial(_attention_pooling_kernel, n_rows=n_rows,
                               hidden_size=hidden_size, valid_rows=valid_rows)

    cost = pl.CostEstimate(
        flops=int(batch * (4 * n_rows * hidden_size + 2 * hidden_size * o_pad)),
        transcendentals=int(batch * n_rows),
        bytes_accessed=int(batch * n_rows * hidden_size * itemsize
                           + hidden_size * o_pad * w_hp.dtype.itemsize
                           + hidden_size * q.dtype.itemsize
                           + batch * o_pad * 4),
    )

    def _const_spec(shape, mode):
        if mode is None:
            return pl.BlockSpec(shape, lambda i: (0, 0))
        return pl.BlockSpec(shape, lambda i: (0, 0), pipeline_mode=mode)

    def _run(const_mode):
        return pl.pallas_call(
            kernel,
            out_shape=jax.ShapeDtypeStruct((batch, o_pad), jnp.float32),
            grid=grid,
            in_specs=[
                pl.BlockSpec((tb, n_rows * hidden_size), lambda i: (i, 0)),  # h: tiled over B
                _const_spec((1, hidden_size), const_mode),                   # q: constant block
                _const_spec((hidden_size, o_pad), const_mode),               # w_h: constant block
            ],
            out_specs=pl.BlockSpec((tb, o_pad), lambda i: (i, 0)),
            compiler_params=pltpu.CompilerParams(
                dimension_semantics=("parallel",),
                vmem_limit_bytes=vmem_limit_bytes),
            cost_estimate=cost,
        )(h2d, q, w_hp)

    try:
        # q / w_h never change block index; single-buffering them reclaims
        # ~2*(H*O_pad + H)*itemsize of VMEM headroom for larger batch tiles.
        out = _run(pl.Buffered(1))
    except Exception:  # fall back cleanly if this JAX build rejects Buffered(1) specs
        out = _run(None)

    return out[:, :out_size]


def attention_pooling_ref(hidden_states, q, w_h):
    """Pure-JAX reference mirroring the PyTorch module exactly."""
    n_layers = len(hidden_states)
    hidden_size = hidden_states[0].shape[-1]
    h = jnp.stack([hidden_states[i][:, 0, :] for i in range(1, n_layers)], axis=0)
    h = h.reshape(-1, n_layers - 1, hidden_size).astype(jnp.float32)
    v = jnp.einsum("oh,blh->bol", q.astype(jnp.float32), h)[:, 0, :]      # (B, L)
    v = jax.nn.softmax(v, axis=-1)
    v_temp = jnp.einsum("bl,blh->bh", v, h)                               # (B, H)
    return v_temp @ w_h.astype(jnp.float32)                               # (B, O)


if __name__ == "__main__":
    key = jax.random.PRNGKey(0)
    n_layers, batch, seq, hidden_size, out_size = 8, 2, 8, 32, 16

    k_hs, k_q, k_w = jax.random.split(key, 3)
    hs_keys = jax.random.split(k_hs, n_layers)
    hidden_states = tuple(
        jax.random.normal(hs_keys[i], (batch, seq, hidden_size), dtype=jnp.float32)
        for i in range(n_layers)
    )
    # deterministic "nn.init.normal_" parameter init
    q = jax.random.normal(k_q, (1, hidden_size), dtype=jnp.float32)
    w_h = jax.random.normal(k_w, (hidden_size, out_size), dtype=jnp.float32)

    out = jax.block_until_ready(attention_pooling(hidden_states, q, w_h))
    ref = attention_pooling_ref(hidden_states, q, w_h)
    assert out.shape == (batch, out_size)
    # tolerance accommodates the EUP approximate reciprocal in the softmax denominator
    assert jnp.allclose(out, ref, atol=1e-2, rtol=1e-2), float(jnp.max(jnp.abs(out - ref)))

    # Also exercise the multi-block grid + masked (non-divisible) last batch tile.
    batch2 = 20
    hidden_states2 = tuple(
        jax.random.normal(hs_keys[i], (batch2, seq, hidden_size), dtype=jnp.float32)
        for i in range(n_layers)
    )
    out2 = jax.block_until_ready(attention_pooling(hidden_states2, q, w_h, tile_b=8))
    ref2 = attention_pooling_ref(hidden_states2, q, w_h)
    assert out2.shape == (batch2, out_size)
    assert jnp.allclose(out2, ref2, atol=1e-2, rtol=1e-2), float(jnp.max(jnp.abs(out2 - ref2)))

    print("KERNEL_OK")
</pallas_src>

<mosaic_0001>
module attributes {stable_mosaic.version = 11 : i64} {
  func.func @_attention_pooling_kernel(%arg0: i32, %arg1: memref<2x224xf32, #tpu.memory_space<vmem>>, %arg2: memref<1x32xf32, #tpu.memory_space<vmem>>, %arg3: memref<32x128xf32, #tpu.memory_space<vmem>>, %arg4: memref<2x128xf32, #tpu.memory_space<vmem>>) attributes {dimension_semantics = [#tpu.dimension_semantics<parallel>], iteration_bounds = array<i64: 1>, scalar_prefetch = 0 : i64, scratch_operands = 0 : i64, tpu.core_type = #tpu.core_type<tc>, window_params = [{transform_indices = @transform_0, window_bounds = array<i64: 2, 224>}, {pipeline_mode = #tpu.pipeline_mode<synchronous>, transform_indices = @transform_1, window_bounds = array<i64: 1, 32>}, {pipeline_mode = #tpu.pipeline_mode<synchronous>, transform_indices = @transform_2, window_bounds = array<i64: 32, 128>}, {transform_indices = @transform_3, window_bounds = array<i64: 2, 128>}]} {
    %c0 = arith.constant 0 : index
    %c0_0 = arith.constant 0 : index
    %0 = vector.load %arg2[%c0, %c0_0] : memref<1x32xf32, #tpu.memory_space<vmem>>, vector<1x32xf32>
    %c0_1 = arith.constant 0 : index
    %c0_2 = arith.constant 0 : index
    %1 = vector.load %arg1[%c0_1, %c0_2] : memref<2x224xf32, #tpu.memory_space<vmem>>, vector<2x32xf32>
    %2 = vector.broadcast %0 : vector<1x32xf32> to vector<2x32xf32>
    %3 = arith.mulf %1, %2 : vector<2x32xf32>
    %cst = arith.constant dense<0.000000e+00> : vector<2xf32>
    %4 = vector.multi_reduction <add>, %3, %cst [1] : vector<2x32xf32> to vector<2xf32>
    %5 = vector.shape_cast %4 : vector<2xf32> to vector<2x1xf32>
    %c0_3 = arith.constant 0 : index
    %c32 = arith.constant 32 : index
    %6 = vector.load %arg1[%c0_3, %c32] : memref<2x224xf32, #tpu.memory_space<vmem>>, vector<2x32xf32>
    %7 = vector.broadcast %0 : vector<1x32xf32> to vector<2x32xf32>
    %8 = arith.mulf %6, %7 : vector<2x32xf32>
    %cst_4 = arith.constant dense<0.000000e+00> : vector<2xf32>
    %9 = vector.multi_reduction <add>, %8, %cst_4 [1] : vector<2x32xf32> to vector<2xf32>
    %10 = vector.shape_cast %9 : vector<2xf32> to vector<2x1xf32>
    %c0_5 = arith.constant 0 : index
    %c64 = arith.constant 64 : index
    %11 = vector.load %arg1[%c0_5, %c64] : memref<2x224xf32, #tpu.memory_space<vmem>>, vector<2x32xf32>
    %12 = vector.broadcast %0 : vector<1x32xf32> to vector<2x32xf32>
    %13 = arith.mulf %11, %12 : vector<2x32xf32>
    %cst_6 = arith.constant dense<0.000000e+00> : vector<2xf32>
    %14 = vector.multi_reduction <add>, %13, %cst_6 [1] : vector<2x32xf32> to vector<2xf32>
    %15 = vector.shape_cast %14 : vector<2xf32> to vector<2x1xf32>
    %c0_7 = arith.constant 0 : index
    %c96 = arith.constant 96 : index
    %16 = vector.load %arg1[%c0_7, %c96] : memref<2x224xf32, #tpu.memory_space<vmem>>, vector<2x32xf32>
    %17 = vector.broadcast %0 : vector<1x32xf32> to vector<2x32xf32>
    %18 = arith.mulf %16, %17 : vector<2x32xf32>
    %cst_8 = arith.constant dense<0.000000e+00> : vector<2xf32>
    %19 = vector.multi_reduction <add>, %18, %cst_8 [1] : vector<2x32xf32> to vector<2xf32>
    %20 = vector.shape_cast %19 : vector<2xf32> to vector<2x1xf32>
    %c0_9 = arith.constant 0 : index
    %c128 = arith.constant 128 : index
    %21 = vector.load %arg1[%c0_9, %c128] : memref<2x224xf32, #tpu.memory_space<vmem>>, vector<2x32xf32>
    %22 = vector.broadcast %0 : vector<1x32xf32> to vector<2x32xf32>
    %23 = arith.mulf %21, %22 : vector<2x32xf32>
    %cst_10 = arith.constant dense<0.000000e+00> : vector<2xf32>
    %24 = vector.multi_reduction <add>, %23, %cst_10 [1] : vector<2x32xf32> to vector<2xf32>
    %25 = vector.shape_cast %24 : vector<2xf32> to vector<2x1xf32>
    %c0_11 = arith.constant 0 : index
    %c160 = arith.constant 160 : index
    %26 = vector.load %arg1[%c0_11, %c160] : memref<2x224xf32, #tpu.memory_space<vmem>>, vector<2x32xf32>
    %27 = vector.broadcast %0 : vector<1x32xf32> to vector<2x32xf32>
    %28 = arith.mulf %26, %27 : vector<2x32xf32>
    %cst_12 = arith.constant dense<0.000000e+00> : vector<2xf32>
    %29 = vector.multi_reduction <add>, %28, %cst_12 [1] : vector<2x32xf32> to vector<2xf32>
    %30 = vector.shape_cast %29 : vector<2xf32> to vector<2x1xf32>
    %c0_13 = arith.constant 0 : index
    %c192 = arith.constant 192 : index
    %31 = vector.load %arg1[%c0_13, %c192] : memref<2x224xf32, #tpu.memory_space<vmem>>, vector<2x32xf32>
    %32 = vector.broadcast %0 : vector<1x32xf32> to vector<2x32xf32>
    %33 = arith.mulf %31, %32 : vector<2x32xf32>
    %cst_14 = arith.constant dense<0.000000e+00> : vector<2xf32>
    %34 = vector.multi_reduction <add>, %33, %cst_14 [1] : vector<2x32xf32> to vector<2xf32>
    %35 = vector.shape_cast %34 : vector<2xf32> to vector<2x1xf32>
    %36 = arith.maximumf %5, %10 : vector<2x1xf32>
    %37 = arith.maximumf %36, %15 : vector<2x1xf32>
    %38 = arith.maximumf %37, %20 : vector<2x1xf32>
    %39 = arith.maximumf %38, %25 : vector<2x1xf32>
    %40 = arith.maximumf %39, %30 : vector<2x1xf32>
    %41 = arith.maximumf %40, %35 : vector<2x1xf32>
    %42 = arith.subf %5, %41 : vector<2x1xf32>
    %43 = math.exp %42 : vector<2x1xf32>
    %44 = arith.subf %10, %41 : vector<2x1xf32>
    %45 = math.exp %44 : vector<2x1xf32>
    %46 = arith.subf %15, %41 : vector<2x1xf32>
    %47 = math.exp %46 : vector<2x1xf32>
    %48 = arith.subf %20, %41 : vector<2x1xf32>
    %49 = math.exp %48 : vector<2x1xf32>
    %50 = arith.subf %25, %41 : vector<2x1xf32>
    %51 = math.exp %50 : vector<2x1xf32>
    %52 = arith.subf %30, %41 : vector<2x1xf32>
    %53 = math.exp %52 : vector<2x1xf32>
    %54 = arith.subf %35, %41 : vector<2x1xf32>
    %55 = math.exp %54 : vector<2x1xf32>
    %56 = arith.addf %43, %45 : vector<2x1xf32>
    %57 = arith.addf %56, %47 : vector<2x1xf32>
    %58 = arith.addf %57, %49 : vector<2x1xf32>
    %59 = arith.addf %58, %51 : vector<2x1xf32>
    %60 = arith.addf %59, %53 : vector<2x1xf32>
    %61 = arith.addf %60, %55 : vector<2x1xf32>
    %62 = tpu.reciprocal %61 {approx = true} : vector<2x1xf32> -> vector<2x1xf32>
    %63 = arith.mulf %43, %62 : vector<2x1xf32>
    %64 = arith.mulf %45, %62 : vector<2x1xf32>
    %65 = arith.mulf %47, %62 : vector<2x1xf32>
    %66 = arith.mulf %49, %62 : vector<2x1xf32>
    %67 = arith.mulf %51, %62 : vector<2x1xf32>
    %68 = arith.mulf %53, %62 : vector<2x1xf32>
    %69 = arith.mulf %55, %62 : vector<2x1xf32>
    %cst_15 = arith.constant 0.000000e+00 : f32
    %70 = vector.broadcast %cst_15 : f32 to vector<2x32xf32>
    %c0_16 = arith.constant 0 : index
    %c0_17 = arith.constant 0 : index
    %71 = vector.load %arg1[%c0_16, %c0_17] : memref<2x224xf32, #tpu.memory_space<vmem>>, vector<2x32xf32>
    %72 = vector.broadcast %63 : vector<2x1xf32> to vector<2x32xf32>
    %73 = arith.mulf %72, %71 : vector<2x32xf32>
    %74 = arith.addf %70, %73 : vector<2x32xf32>
    %c0_18 = arith.constant 0 : index
    %c32_19 = arith.constant 32 : index
    %75 = vector.load %arg1[%c0_18, %c32_19] : memref<2x224xf32, #tpu.memory_space<vmem>>, vector<2x32xf32>
    %76 = vector.broadcast %64 : vector<2x1xf32> to vector<2x32xf32>
    %77 = arith.mulf %76, %75 : vector<2x32xf32>
    %78 = arith.addf %74, %77 : vector<2x32xf32>
    %c0_20 = arith.constant 0 : index
    %c64_21 = arith.constant 64 : index
    %79 = vector.load %arg1[%c0_20, %c64_21] : memref<2x224xf32, #tpu.memory_space<vmem>>, vector<2x32xf32>
    %80 = vector.broadcast %65 : vector<2x1xf32> to vector<2x32xf32>
    %81 = arith.mulf %80, %79 : vector<2x32xf32>
    %82 = arith.addf %78, %81 : vector<2x32xf32>
    %c0_22 = arith.constant 0 : index
    %c96_23 = arith.constant 96 : index
    %83 = vector.load %arg1[%c0_22, %c96_23] : memref<2x224xf32, #tpu.memory_space<vmem>>, vector<2x32xf32>
    %84 = vector.broadcast %66 : vector<2x1xf32> to vector<2x32xf32>
    %85 = arith.mulf %84, %83 : vector<2x32xf32>
    %86 = arith.addf %82, %85 : vector<2x32xf32>
    %c0_24 = arith.constant 0 : index
    %c128_25 = arith.constant 128 : index
    %87 = vector.load %arg1[%c0_24, %c128_25] : memref<2x224xf32, #tpu.memory_space<vmem>>, vector<2x32xf32>
    %88 = vector.broadcast %67 : vector<2x1xf32> to vector<2x32xf32>
    %89 = arith.mulf %88, %87 : vector<2x32xf32>
    %90 = arith.addf %86, %89 : vector<2x32xf32>
    %c0_26 = arith.constant 0 : index
    %c160_27 = arith.constant 160 : index
    %91 = vector.load %arg1[%c0_26, %c160_27] : memref<2x224xf32, #tpu.memory_space<vmem>>, vector<2x32xf32>
    %92 = vector.broadcast %68 : vector<2x1xf32> to vector<2x32xf32>
    %93 = arith.mulf %92, %91 : vector<2x32xf32>
    %94 = arith.addf %90, %93 : vector<2x32xf32>
    %c0_28 = arith.constant 0 : index
    %c192_29 = arith.constant 192 : index
    %95 = vector.load %arg1[%c0_28, %c192_29] : memref<2x224xf32, #tpu.memory_space<vmem>>, vector<2x32xf32>
    %96 = vector.broadcast %69 : vector<2x1xf32> to vector<2x32xf32>
    %97 = arith.mulf %96, %95 : vector<2x32xf32>
    %98 = arith.addf %94, %97 : vector<2x32xf32>
    %c0_30 = arith.constant 0 : index
    %c0_31 = arith.constant 0 : index
    %99 = vector.load %arg3[%c0_30, %c0_31] : memref<32x128xf32, #tpu.memory_space<vmem>>, vector<32x128xf32>
    %cst_32 = arith.constant dense<0.000000e+00> : vector<2x128xf32>
    %100 = tpu.matmul %98, %99, %cst_32 {dimension_numbers = #tpu.dot_dimension_numbers<[1], [0], [0], [1], [0, 0, 1, 1], [], []>} : vector<2x32xf32>, vector<32x128xf32>, vector<2x128xf32> -> vector<2x128xf32>
    %c0_33 = arith.constant 0 : index
    %c0_34 = arith.constant 0 : index
    %101 = vector.load %arg4[%c0_33, %c0_34] : memref<2x128xf32, #tpu.memory_space<vmem>>, vector<2x128xf32>
    tpu.vector_store %arg4[%c0_33, %c0_34], %100 {strides = array<i32>} : memref<2x128xf32, #tpu.memory_space<vmem>>, vector<2x128xf32>,
    return
  }
  func.func @transform_0(%arg0: i32) -> (i32, i32) {
    %c0_i32 = arith.constant 0 : i32
    %c0_i32_0 = arith.constant 0 : i32
    return %arg0, %c0_i32 : i32, i32
  }
  func.func @transform_1(%arg0: i32) -> (i32, i32) {
    %c0_i32 = arith.constant 0 : i32
    %c0_i32_0 = arith.constant 0 : i32
    %c0_i32_1 = arith.constant 0 : i32
    return %c0_i32, %c0_i32_0 : i32, i32
  }
  func.func @transform_2(%arg0: i32) -> (i32, i32) {
    %c0_i32 = arith.constant 0 : i32
    %c0_i32_0 = arith.constant 0 : i32
    %c0_i32_1 = arith.constant 0 : i32
    return %c0_i32, %c0_i32_0 : i32, i32
  }
  func.func @transform_3(%arg0: i32) -> (i32, i32) {
    %c0_i32 = arith.constant 0 : i32
    %c0_i32_0 = arith.constant 0 : i32
    return %arg0, %c0_i32 : i32, i32
  }
}

module attributes {stable_mosaic.version = 11 : i64} {
  func.func @_attention_pooling_kernel(%arg0: i32, %arg1: memref<2x224xf32, #tpu.memory_space<vmem>>, %arg2: memref<1x32xf32, #tpu.memory_space<vmem>>, %arg3: memref<32x128xf32, #tpu.memory_space<vmem>>, %arg4: memref<2x128xf32, #tpu.memory_space<vmem>>) attributes {dimension_semantics = [#tpu.dimension_semantics<parallel>], iteration_bounds = array<i64: 1>, scalar_prefetch = 0 : i64, scratch_operands = 0 : i64, tpu.core_type = #tpu.core_type<tc>, window_params = [{transform_indices = @transform_0, window_bounds = array<i64: 2, 224>}, {pipeline_mode = #tpu.pipeline_mode<synchronous>, transform_indices = @transform_1, window_bounds = array<i64: 1, 32>}, {pipeline_mode = #tpu.pipeline_mode<synchronous>, transform_indices = @transform_2, window_bounds = array<i64: 32, 128>}, {transform_indices = @transform_3, window_bounds = array<i64: 2, 128>}]} {
    %c0 = arith.constant 0 : index
    %c0_0 = arith.constant 0 : index
    %0 = vector.load %arg2[%c0, %c0_0] : memref<1x32xf32, #tpu.memory_space<vmem>>, vector<1x32xf32>
    %c0_1 = arith.constant 0 : index
    %c0_2 = arith.constant 0 : index
    %1 = vector.load %arg1[%c0_1, %c0_2] : memref<2x224xf32, #tpu.memory_space<vmem>>, vector<2x32xf32>
    %2 = vector.broadcast %0 : vector<1x32xf32> to vector<2x32xf32>
    %3 = arith.mulf %1, %2 : vector<2x32xf32>
    %cst = arith.constant dense<0.000000e+00> : vector<2xf32>
    %4 = vector.multi_reduction <add>, %3, %cst [1] : vector<2x32xf32> to vector<2xf32>
    %5 = vector.shape_cast %4 : vector<2xf32> to vector<2x1xf32>
    %c0_3 = arith.constant 0 : index
    %c32 = arith.constant 32 : index
    %6 = vector.load %arg1[%c0_3, %c32] : memref<2x224xf32, #tpu.memory_space<vmem>>, vector<2x32xf32>
    %7 = vector.broadcast %0 : vector<1x32xf32> to vector<2x32xf32>
    %8 = arith.mulf %6, %7 : vector<2x32xf32>
    %cst_4 = arith.constant dense<0.000000e+00> : vector<2xf32>
    %9 = vector.multi_reduction <add>, %8, %cst_4 [1] : vector<2x32xf32> to vector<2xf32>
    %10 = vector.shape_cast %9 : vector<2xf32> to vector<2x1xf32>
    %c0_5 = arith.constant 0 : index
    %c64 = arith.constant 64 : index
    %11 = vector.load %arg1[%c0_5, %c64] : memref<2x224xf32, #tpu.memory_space<vmem>>, vector<2x32xf32>
    %12 = vector.broadcast %0 : vector<1x32xf32> to vector<2x32xf32>
    %13 = arith.mulf %11, %12 : vector<2x32xf32>
    %cst_6 = arith.constant dense<0.000000e+00> : vector<2xf32>
    %14 = vector.multi_reduction <add>, %13, %cst_6 [1] : vector<2x32xf32> to vector<2xf32>
    %15 = vector.shape_cast %14 : vector<2xf32> to vector<2x1xf32>
    %c0_7 = arith.constant 0 : index
    %c96 = arith.constant 96 : index
    %16 = vector.load %arg1[%c0_7, %c96] : memref<2x224xf32, #tpu.memory_space<vmem>>, vector<2x32xf32>
    %17 = vector.broadcast %0 : vector<1x32xf32> to vector<2x32xf32>
    %18 = arith.mulf %16, %17 : vector<2x32xf32>
    %cst_8 = arith.constant dense<0.000000e+00> : vector<2xf32>
    %19 = vector.multi_reduction <add>, %18, %cst_8 [1] : vector<2x32xf32> to vector<2xf32>
    %20 = vector.shape_cast %19 : vector<2xf32> to vector<2x1xf32>
    %c0_9 = arith.constant 0 : index
    %c128 = arith.constant 128 : index
    %21 = vector.load %arg1[%c0_9, %c128] : memref<2x224xf32, #tpu.memory_space<vmem>>, vector<2x32xf32>
    %22 = vector.broadcast %0 : vector<1x32xf32> to vector<2x32xf32>
    %23 = arith.mulf %21, %22 : vector<2x32xf32>
    %cst_10 = arith.constant dense<0.000000e+00> : vector<2xf32>
    %24 = vector.multi_reduction <add>, %23, %cst_10 [1] : vector<2x32xf32> to vector<2xf32>
    %25 = vector.shape_cast %24 : vector<2xf32> to vector<2x1xf32>
    %c0_11 = arith.constant 0 : index
    %c160 = arith.constant 160 : index
    %26 = vector.load %arg1[%c0_11, %c160] : memref<2x224xf32, #tpu.memory_space<vmem>>, vector<2x32xf32>
    %27 = vector.broadcast %0 : vector<1x32xf32> to vector<2x32xf32>
    %28 = arith.mulf %26, %27 : vector<2x32xf32>
    %cst_12 = arith.constant dense<0.000000e+00> : vector<2xf32>
    %29 = vector.multi_reduction <add>, %28, %cst_12 [1] : vector<2x32xf32> to vector<2xf32>
    %30 = vector.shape_cast %29 : vector<2xf32> to vector<2x1xf32>
    %c0_13 = arith.constant 0 : index
    %c192 = arith.constant 192 : index
    %31 = vector.load %arg1[%c0_13, %c192] : memref<2x224xf32, #tpu.memory_space<vmem>>, vector<2x32xf32>
    %32 = vector.broadcast %0 : vector<1x32xf32> to vector<2x32xf32>
    %33 = arith.mulf %31, %32 : vector<2x32xf32>
    %cst_14 = arith.constant dense<0.000000e+00> : vector<2xf32>
    %34 = vector.multi_reduction <add>, %33, %cst_14 [1] : vector<2x32xf32> to vector<2xf32>
    %35 = vector.shape_cast %34 : vector<2xf32> to vector<2x1xf32>
    %36 = arith.maximumf %5, %10 : vector<2x1xf32>
    %37 = arith.maximumf %36, %15 : vector<2x1xf32>
    %38 = arith.maximumf %37, %20 : vector<2x1xf32>
    %39 = arith.maximumf %38, %25 : vector<2x1xf32>
    %40 = arith.maximumf %39, %30 : vector<2x1xf32>
    %41 = arith.maximumf %40, %35 : vector<2x1xf32>
    %42 = arith.subf %5, %41 : vector<2x1xf32>
    %43 = math.exp %42 : vector<2x1xf32>
    %44 = arith.subf %10, %41 : vector<2x1xf32>
    %45 = math.exp %44 : vector<2x1xf32>
    %46 = arith.subf %15, %41 : vector<2x1xf32>
    %47 = math.exp %46 : vector<2x1xf32>
    %48 = arith.subf %20, %41 : vector<2x1xf32>
    %49 = math.exp %48 : vector<2x1xf32>
    %50 = arith.subf %25, %41 : vector<2x1xf32>
    %51 = math.exp %50 : vector<2x1xf32>
    %52 = arith.subf %30, %41 : vector<2x1xf32>
    %53 = math.exp %52 : vector<2x1xf32>
    %54 = arith.subf %35, %41 : vector<2x1xf32>
    %55 = math.exp %54 : vector<2x1xf32>
    %56 = arith.addf %43, %45 : vector<2x1xf32>
    %57 = arith.addf %56, %47 : vector<2x1xf32>
    %58 = arith.addf %57, %49 : vector<2x1xf32>
    %59 = arith.addf %58, %51 : vector<2x1xf32>
    %60 = arith.addf %59, %53 : vector<2x1xf32>
    %61 = arith.addf %60, %55 : vector<2x1xf32>
    %62 = tpu.reciprocal %61 {approx = true} : vector<2x1xf32> -> vector<2x1xf32>
    %63 = arith.mulf %43, %62 : vector<2x1xf32>
    %64 = arith.mulf %45, %62 : vector<2x1xf32>
    %65 = arith.mulf %47, %62 : vector<2x1xf32>
    %66 = arith.mulf %49, %62 : vector<2x1xf32>
    %67 = arith.mulf %51, %62 : vector<2x1xf32>
    %68 = arith.mulf %53, %62 : vector<2x1xf32>
    %69 = arith.mulf %55, %62 : vector<2x1xf32>
    %cst_15 = arith.constant 0.000000e+00 : f32
    %70 = vector.broadcast %cst_15 : f32 to vector<2x32xf32>
    %c0_16 = arith.constant 0 : index
    %c0_17 = arith.constant 0 : index
    %71 = vector.load %arg1[%c0_16, %c0_17] : memref<2x224xf32, #tpu.memory_space<vmem>>, vector<2x32xf32>
    %72 = vector.broadcast %63 : vector<2x1xf32> to vector<2x32xf32>
    %73 = arith.mulf %72, %71 : vector<2x32xf32>
    %74 = arith.addf %70, %73 : vector<2x32xf32>
    %c0_18 = arith.constant 0 : index
    %c32_19 = arith.constant 32 : index
    %75 = vector.load %arg1[%c0_18, %c32_19] : memref<2x224xf32, #tpu.memory_space<vmem>>, vector<2x32xf32>
    %76 = vector.broadcast %64 : vector<2x1xf32> to vector<2x32xf32>
    %77 = arith.mulf %76, %75 : vector<2x32xf32>
    %78 = arith.addf %74, %77 : vector<2x32xf32>
    %c0_20 = arith.constant 0 : index
    %c64_21 = arith.constant 64 : index
    %79 = vector.load %arg1[%c0_20, %c64_21] : memref<2x224xf32, #tpu.memory_space<vmem>>, vector<2x32xf32>
    %80 = vector.broadcast %65 : vector<2x1xf32> to vector<2x32xf32>
    %81 = arith.mulf %80, %79 : vector<2x32xf32>
    %82 = arith.addf %78, %81 : vector<2x32xf32>
    %c0_22 = arith.constant 0 : index
    %c96_23 = arith.constant 96 : index
    %83 = vector.load %arg1[%c0_22, %c96_23] : memref<2x224xf32, #tpu.memory_space<vmem>>, vector<2x32xf32>
    %84 = vector.broadcast %66 : vector<2x1xf32> to vector<2x32xf32>
    %85 = arith.mulf %84, %83 : vector<2x32xf32>
    %86 = arith.addf %82, %85 : vector<2x32xf32>
    %c0_24 = arith.constant 0 : index
    %c128_25 = arith.constant 128 : index
    %87 = vector.load %arg1[%c0_24, %c128_25] : memref<2x224xf32, #tpu.memory_space<vmem>>, vector<2x32xf32>
    %88 = vector.broadcast %67 : vector<2x1xf32> to vector<2x32xf32>
    %89 = arith.mulf %88, %87 : vector<2x32xf32>
    %90 = arith.addf %86, %89 : vector<2x32xf32>
    %c0_26 = arith.constant 0 : index
    %c160_27 = arith.constant 160 : index
    %91 = vector.load %arg1[%c0_26, %c160_27] : memref<2x224xf32, #tpu.memory_space<vmem>>, vector<2x32xf32>
    %92 = vector.broadcast %68 : vector<2x1xf32> to vector<2x32xf32>
    %93 = arith.mulf %92, %91 : vector<2x32xf32>
    %94 = arith.addf %90, %93 : vector<2x32xf32>
    %c0_28 = arith.constant 0 : index
    %c192_29 = arith.constant 192 : index
    %95 = vector.load %arg1[%c0_28, %c192_29] : memref<2x224xf32, #tpu.memory_space<vmem>>, vector<2x32xf32>
    %96 = vector.broadcast %69 : vector<2x1xf32> to vector<2x32xf32>
    %97 = arith.mulf %96, %95 : vector<2x32xf32>
    %98 = arith.addf %94, %97 : vector<2x32xf32>
    %c0_30 = arith.constant 0 : index
    %c0_31 = arith.constant 0 : index
    %99 = vector.load %arg3[%c0_30, %c0_31] : memref<32x128xf32, #tpu.memory_space<vmem>>, vector<32x128xf32>
    %cst_32 = arith.constant dense<0.000000e+00> : vector<2x128xf32>
    %100 = tpu.matmul %98, %99, %cst_32 {dimension_numbers = #tpu.dot_dimension_numbers<[1], [0], [0], [1], [0, 0, 1, 1], [], []>} : vector<2x32xf32>, vector<32x128xf32>, vector<2x128xf32> -> vector<2x128xf32>
    %c0_33 = arith.constant 0 : index
    %c0_34 = arith.constant 0 : index
    %101 = vector.load %arg4[%c0_33, %c0_34] : memref<2x128xf32, #tpu.memory_space<vmem>>, vector<2x128xf32>
    tpu.vector_store %arg4[%c0_33, %c0_34], %100 {strides = array<i32>} : memref<2x128xf32, #tpu.memory_space<vmem>>, vector<2x128xf32>,
    return
  }
  func.func @transform_0(%arg0: i32) -> (i32, i32) {
    %c0_i32 = arith.constant 0 : i32
    %c0_i32_0 = arith.constant 0 : i32
    return %arg0, %c0_i32 : i32, i32
  }
  func.func @transform_1(%arg0: i32) -> (i32, i32) {
    %c0_i32 = arith.constant 0 : i32
    %c0_i32_0 = arith.constant 0 : i32
    %c0_i32_1 = arith.constant 0 : i32
    return %c0_i32, %c0_i32_0 : i32, i32
  }
  func.func @transform_2(%arg0: i32) -> (i32, i32) {
    %c0_i32 = arith.constant 0 : i32
    %c0_i32_0 = arith.constant 0 : i32
    %c0_i32_1 = arith.constant 0 : i32
    return %c0_i32, %c0_i32_0 : i32, i32
  }
  func.func @transform_3(%arg0: i32) -> (i32, i32) {
    %c0_i32 = arith.constant 0 : i32
    %c0_i32_0 = arith.constant 0 : i32
    return %arg0, %c0_i32 : i32, i32
  }
}

</mosaic_0001>

<llo_original>
// kernel: tpu_custom_call.1
$region0: #{tpu_custom_call.1}
  #allocation0 [shape = 'u32[]', space=smem, size = 0x4, offset = 0x4, fixed_abs, tag = 'smem constant byte address 0x4 - core index']
  #allocation1 [shape = 'u32[144,128]{1,0:T(1,128)}', space=vmem, size = 0x12000, scoped, tag = 'internal scratch']
  %s0 = inlined_call_operand.hbm [shape: f32[2,224], index: 0, kind: input, shape index: {}]
  %s1 = inlined_call_operand.vmem [shape: f32[1,32], index: 1, kind: input, shape index: {}]
  %s2 = inlined_call_operand.hbm [shape: f32[32,128], index: 2, kind: input, shape index: {}]
  %s3 = inlined_call_operand.hbm [shape: f32[2,128], index: 3, kind: output, shape index: {}]
  %s4 = sld [smem:[#allocation0]]
  $region30: #{tpu_custom_call.1} parent=0
    _
  %s6 = ssub.s32 1, %s4
  %s7 = scalar_select 0, %s6, %s4
  $region1: #{tpu_custom_call.1} parent=0
    #allocation2 [shape = 'u8[2048]{0}', space=vmem, size = 0x800, scoped, tag = 'input window, operand 0, single buffered']
    #allocation3 [shape = 's32[1]{0}', space=sflag, size = 0x4, scoped, tag = 'scoped memory for tpu_custom_call.1']
    #allocation4 [shape = 's32[1]{0}', space=sflag, size = 0x4, scoped, tag = 'scoped memory for tpu_custom_call.1']
    #allocation5 [shape = 'u8[16384]{0}', space=vmem, size = 0x4000, scoped, tag = 'input window, operand 2, single buffered']
    #allocation6 [shape = 's32[1]{0}', space=sflag, size = 0x4, scoped, tag = 'scoped memory for tpu_custom_call.1']
    #allocation7 [shape = 'u8[1024]{0}', space=vmem, size = 0x400, scoped, tag = 'output window, operand 0, single buffered']
    %8 = vsyncpa [#allocation3], 0
    %9 = vsyncpa [#allocation6], 0
    %10 = vsyncpa [#allocation4], 0
    // Predicated region
    $region2: #{tpu_custom_call.1} parent=1 // pred_check
      _
    $region3: #{tpu_custom_call.1} parent=1 // pred_check_branch
      %12 = sbr.rel (0) target = $region5
    $region4: #{tpu_custom_call.1} parent=1 // pred_region
      %s14 = ssub.s32 64, 64
      %15 = vsyncadd [#allocation3], %s14
      %s17 = sshll.u32 [#allocation2], 4
      %s18 = int_to_ptr.vmem [resolvable:$true] %s17
      %20 = dma.hbm_to_vmem [thread:$0]  %s0, 64, %s18, [#allocation3]
    $region5: #{tpu_custom_call.1} parent=1 // pred_fallthru
      _
    // Predicated region
    $region6: #{tpu_custom_call.1} parent=1 // pred_check
      _
    $region7: #{tpu_custom_call.1} parent=1 // pred_check_branch
      %22 = sbr.rel (0) target = $region9
    $region8: #{tpu_custom_call.1} parent=1 // pred_region
      _
    $region9: #{tpu_custom_call.1} parent=1 // pred_fallthru
      _
    // Predicated region
    $region10: #{tpu_custom_call.1} parent=1 // pred_check
      _
    $region11: #{tpu_custom_call.1} parent=1 // pred_check_branch
      %24 = sbr.rel (0) target = $region13
    $region12: #{tpu_custom_call.1} parent=1 // pred_region
      %s26 = ssub.s32 512, 512
      %27 = vsyncadd [#allocation6], %s26
      %s28 = sshll.u32 [#allocation5], 4
      %s29 = int_to_ptr.vmem [resolvable:$true] %s28
      %34 = dma.hbm_to_vmem [thread:$0]  %s2, 512, %s29, [#allocation6], 128, 128, 8
    $region13: #{tpu_custom_call.1} parent=1 // pred_fallthru
      _
    // Predicated region
    $region14: #{tpu_custom_call.1} parent=1 // pred_check
      _
    $region15: #{tpu_custom_call.1} parent=1 // pred_check_branch
      %36 = sbr.rel (0) target = $region17
    $region16: #{tpu_custom_call.1} parent=1 // pred_region
      %37 = dma.done [#allocation3], 64
    $region17: #{tpu_custom_call.1} parent=1 // pred_fallthru
      _
    // Predicated region
    $region18: #{tpu_custom_call.1} parent=1 // pred_check
      _
    $region19: #{tpu_custom_call.1} parent=1 // pred_check_branch
      %39 = sbr.rel (0) target = $region21
    $region20: #{tpu_custom_call.1} parent=1 // pred_region
      %40 = dma.done [#allocation6], 512
    $region21: #{tpu_custom_call.1} parent=1 // pred_fallthru
      _
    %v41 = vld [vmem:[%s1] sm:$0x1]
    %v42 = vld [vmem:[#allocation2] sm:$0x3]
    %v44 = vlaneseq
    %v45 = vshrl.u32 %v44, 7
    %v46 = vsub.s32 0, %v45
    %v47 = vrot.slane %v41, %v46
    %v49 = vmul.f32 %v42, %v47
    %vm50 = vcmask 254976
    %v51 = vsel %vm50, %v49, 0.0
    %52 = vadd.xlane.f32.xlu0 %v51
    %v53 = vpop.xlane.xlu0 %52
    %v55 = vunpack.c.l.s4 1983009808
    %v56 = vunpack.c.0.s8 %v55
    %v57 = vlaneseq
    %v58 = vshrl.u32 %v57, 7
    %v59 = vsub.s32 %v56, %v58
    %v60 = vrot.slane %v47, %v59
    %61 = vrot.lane.b32.xlu0 %v60, 32
    %v62 = vpop.permute.xlu0 %61
    %v64 = vmul.f32 %v42, %v62
    %v67 = vunpack.c.l.s4 1983009808
    %v68 = vunpack.c.0.s8 %v67
    %v69 = vlaneseq
    %v70 = vshrl.u32 %v69, 7
    %v71 = vsub.s32 %v68, %v70
    %v72 = vrot.slane %v64, %v71
    %73 = vrot.lane.b32.xlu0 %v72, 96
    %v74 = vpop.permute.xlu0 %73
    %v76 = vsel %vm50, %v74, 0.0
    %77 = vadd.xlane.f32.xlu0 %v76
    %v78 = vpop.xlane.xlu0 %77
    %79 = vrot.lane.b32.xlu0 %v60, 64
    %v80 = vpop.permute.xlu0 %79
    %v82 = vmul.f32 %v42, %v80
    %v85 = vunpack.c.l.s4 1983009808
    %v86 = vunpack.c.0.s8 %v85
    %v87 = vlaneseq
    %v88 = vshrl.u32 %v87, 7
    %v89 = vsub.s32 %v86, %v88
    %v90 = vrot.slane %v82, %v89
    %91 = vrot.lane.b32.xlu0 %v90, 64
    %v92 = vpop.permute.xlu0 %91
    %v94 = vsel %vm50, %v92, 0.0
    %95 = vadd.xlane.f32.xlu0 %v94
    %v96 = vpop.xlane.xlu0 %95
    %97 = vrot.lane.b32.xlu0 %v60, 96
    %v98 = vpop.permute.xlu0 %97
    %v100 = vmul.f32 %v42, %v98
    %v103 = vunpack.c.l.s4 1983009808
    %v104 = vunpack.c.0.s8 %v103
    %v105 = vlaneseq
    %v106 = vshrl.u32 %v105, 7
    %v107 = vsub.s32 %v104, %v106
    %v108 = vrot.slane %v100, %v107
    %109 = vrot.lane.b32.xlu0 %v108, 32
    %v110 = vpop.permute.xlu0 %109
    %v112 = vsel %vm50, %v110, 0.0
    %113 = vadd.xlane.f32.xlu0 %v112
    %v114 = vpop.xlane.xlu0 %113
    %v115 = vld [vmem:[#allocation2 + $0x2] sm:$0x3]
    %v116 = vmul.f32 %v115, %v47
    %v117 = vsel %vm50, %v116, 0.0
    %118 = vadd.xlane.f32.xlu0 %v117
    %v119 = vpop.xlane.xlu0 %118
    %v120 = vmul.f32 %v115, %v62
    %v123 = vunpack.c.l.s4 1983009808
    %v124 = vunpack.c.0.s8 %v123
    %v125 = vlaneseq
    %v126 = vshrl.u32 %v125, 7
    %v127 = vsub.s32 %v124, %v126
    %v128 = vrot.slane %v120, %v127
    %129 = vrot.lane.b32.xlu0 %v128, 96
    %v130 = vpop.permute.xlu0 %129
    %v132 = vsel %vm50, %v130, 0.0
    %133 = vadd.xlane.f32.xlu0 %v132
    %v134 = vpop.xlane.xlu0 %133
    %v135 = vmul.f32 %v115, %v80
    %v138 = vunpack.c.l.s4 1983009808
    %v139 = vunpack.c.0.s8 %v138
    %v140 = vlaneseq
    %v141 = vshrl.u32 %v140, 7
    %v142 = vsub.s32 %v139, %v141
    %v143 = vrot.slane %v135, %v142
    %144 = vrot.lane.b32.xlu0 %v143, 64
    %v145 = vpop.permute.xlu0 %144
    %v147 = vsel %vm50, %v145, 0.0
    %148 = vadd.xlane.f32.xlu0 %v147
    %v149 = vpop.xlane.xlu0 %148
    %v150 = vmax.f32 %v53, %v78
    %v151 = vmax.f32 %v150, %v96
    %v152 = vmax.f32 %v151, %v114
    %v153 = vmax.f32 %v152, %v119
    %v154 = vmax.f32 %v153, %v134
    %v155 = vmax.f32 %v154, %v149
    %v156 = vsub.f32 %v53, %v155
    %v157 = vmul.f32 %v156, 1.442695
    %v158 = vpow.pop %v157
    %v159 = vsub.f32 %v78, %v155
    %v160 = vmul.f32 %v159, 1.442695
    %v161 = vpow.pop %v160
    %v162 = vsub.f32 %v96, %v155
    %v163 = vmul.f32 %v162, 1.442695
    %v164 = vpow.pop %v163
    %v165 = vsub.f32 %v114, %v155
    %v166 = vmul.f32 %v165, 1.442695
    %v167 = vpow.pop %v166
    %v168 = vsub.f32 %v119, %v155
    %v169 = vmul.f32 %v168, 1.442695
    %v170 = vpow.pop %v169
    %v171 = vsub.f32 %v134, %v155
    %v172 = vmul.f32 %v171, 1.442695
    %v173 = vpow.pop %v172
    %v174 = vsub.f32 %v149, %v155
    %v175 = vmul.f32 %v174, 1.442695
    %v176 = vpow.pop %v175
    %v177 = vadd.f32 %v158, %v161
    %v178 = vadd.f32 %v177, %v164
    %v179 = vadd.f32 %v178, %v167
    %v180 = vadd.f32 %v179, %v170
    %v181 = vadd.f32 %v180, %v173
    %v182 = vadd.f32 %v181, %v176
    %v183 = vrcp.pop %v182
    %v184 = vmul.f32 %v158, %v183
    %v185 = vmul.f32 %v161, %v183
    %v186 = vmul.f32 %v164, %v183
    %v187 = vmul.f32 %v167, %v183
    %v188 = vmul.f32 %v170, %v183
    %v189 = vmul.f32 %v173, %v183
    %v190 = vmul.f32 %v176, %v183
    %v191 = vmul.f32 %v184, %v42
    %v192 = vadd.f32 %v191, 0.0
    %v195 = vunpack.c.l.s4 1983009808
    %v196 = vunpack.c.0.s8 %v195
    %v197 = vlaneseq
    %v198 = vshrl.u32 %v197, 7
    %v199 = vsub.s32 %v196, %v198
    %v200 = vrot.slane %v42, %v199
    %201 = vrot.lane.b32.xlu0 %v200, 96
    %v202 = vpop.permute.xlu0 %201
    %v204 = vmul.f32 %v185, %v202
    %v205 = vadd.f32 %v192, %v204
    %206 = vrot.lane.b32.xlu0 %v200, 64
    %v207 = vpop.permute.xlu0 %206
    %v209 = vmul.f32 %v186, %v207
    %v210 = vadd.f32 %v205, %v209
    %211 = vrot.lane.b32.xlu0 %v200, 32
    %v212 = vpop.permute.xlu0 %211
    %v214 = vmul.f32 %v187, %v212
    %v215 = vadd.f32 %v210, %v214
    %v216 = vmul.f32 %v188, %v115
    %v217 = vadd.f32 %v215, %v216
    %v220 = vunpack.c.l.s4 1983009808
    %v221 = vunpack.c.0.s8 %v220
    %v222 = vlaneseq
    %v223 = vshrl.u32 %v222, 7
    %v224 = vsub.s32 %v221, %v223
    %v225 = vrot.slane %v115, %v224
    %226 = vrot.lane.b32.xlu0 %v225, 96
    %v227 = vpop.permute.xlu0 %226
    %v229 = vmul.f32 %v189, %v227
    %v230 = vadd.f32 %v217, %v229
    %231 = vrot.lane.b32.xlu0 %v225, 64
    %v232 = vpop.permute.xlu0 %231
    %v234 = vmul.f32 %v190, %v232
    %v235 = vadd.f32 %v230, %v234
    %v236 = vld [vmem:[#allocation5] sm:$0xff]
    %v237 = vld [vmem:[#allocation5 + $0x8] sm:$0xff]
    %v238 = vld [vmem:[#allocation5 + $0x10] sm:$0xff]
    %v239 = vld [vmem:[#allocation5 + $0x18] sm:$0xff]
    %vm240 = vcmask 261120
    %v242 = vsel %vm240, %v235, 0
    %244 = vmatprep.subr.mxu0 0.0
    %245 = vmatpush1.msra.mxu0 %v236
    %246 = vmatprep.subr.mxu0 0.0
    %247 = vmatpush1.msra.mxu0 %v237
    %248 = vmatprep.subr.mxu0 0.0
    %249 = vmatpush1.msra.mxu0 %v238
    %250 = vmatprep.subr.mxu0 0.0
    %251 = vmatpush1.msra.mxu0 %v239
    %252 = vmatprep.subr.mxu0 0.0
    %253 = vmatpush1.msra.mxu0 0.0
    %254 = vmatprep.subr.mxu0 0.0
    %255 = vmatpush1.msra.mxu0 0.0
    %256 = vmatprep.subr.mxu0 0.0
    %257 = vmatpush1.msra.mxu0 0.0
    %258 = vmatprep.subr.mxu0 0.0
    %259 = vmatpush1.msra.mxu0 0.0
    %260 = vmatprep.subr.mxu0 0.0
    %261 = vmatpush1.msra.mxu0 0.0
    %262 = vmatprep.subr.mxu0 0.0
    %263 = vmatpush1.msra.mxu0 0.0
    %264 = vmatprep.subr.mxu0 0.0
    %265 = vmatpush1.msra.mxu0 0.0
    %266 = vmatprep.subr.mxu0 0.0
    %267 = vmatpush1.msra.mxu0 0.0
    %268 = vmatprep.subr.mxu0 0.0
    %269 = vmatpush1.msra.mxu0 0.0
    %270 = vmatprep.subr.mxu0 0.0
    %271 = vmatpush1.msra.mxu0 0.0
    %272 = vmatprep.subr.mxu0 0.0
    %273 = vmatpush1.msra.mxu0 0.0
    %274 = vmatprep.subr.mxu0 0.0
    %275 = vmatpush1.msra.mxu0 0.0
    %276 = vmatprep.subr.mxu0 0.0
    %277 = vmatpush1.msra.mxu0 0.0
    %278 = vmatprep.subr.mxu0 0.0
    %279 = vmatpush1.msra.mxu0 0.0
    %280 = vmatprep.subr.mxu0 0.0
    %281 = vmatpush1.msra.mxu0 0.0
    %282 = vmatprep.subr.mxu0 0.0
    %283 = vmatpush1.msra.mxu0 0.0
    %284 = vmatprep.subr.mxu0 0.0
    %285 = vmatpush1.msra.mxu0 0.0
    %286 = vmatprep.subr.mxu0 0.0
    %287 = vmatpush1.msra.mxu0 0.0
    %288 = vmatprep.subr.mxu0 0.0
    %289 = vmatpush1.msra.mxu0 0.0
    %290 = vmatprep.subr.mxu0 0.0
    %291 = vmatpush1.msra.mxu0 0.0
    %292 = vmatprep.subr.mxu0 0.0
    %293 = vmatpush1.msra.mxu0 0.0
    %294 = vmatprep.subr.mxu0 0.0
    %295 = vmatpush1.msra.mxu0 0.0
    %296 = vmatprep.subr.mxu0 0.0
    %297 = vmatpush1.msra.mxu0 0.0
    %298 = vmatprep.subr.mxu0 0.0
    %299 = vmatpush1.msra.mxu0 0.0
    %300 = vmatprep.subr.mxu0 0.0
    %301 = vmatpush1.msra.mxu0 0.0
    %302 = vmatprep.subr.mxu0 0.0
    %303 = vmatpush1.msra.mxu0 0.0
    %304 = vmatprep.subr.mxu0 0.0
    %305 = vmatpush1.msra.mxu0 0.0
    %306 = vmatprep.subr.mxu0 0.0
    %307 = vmatpush1.msra.mxu0 0.0
    %308 = vmatprep.mubr.f32.mxu0 0.0
    %309 = vmatmul.mubr.f32.gmra.mrb[0].mxu0 %v242
    %v310 = vpop.f32.mrb[0].mxu0
    %v311 = vadd.f32 0.0, %v310
    %v312 = vpop.f32.mrb[0].mxu0
    %313 = vdwg.mxu0
    %314 = vst [vmem:[#allocation7] sm:$0x3] %v311
    // Predicated region
    $region22: #{tpu_custom_call.1} parent=1 // pred_check
      _
    $region23: #{tpu_custom_call.1} parent=1 // pred_check_branch
      %316 = sbr.rel (0) target = $region25
    $region24: #{tpu_custom_call.1} parent=1 // pred_region
      %s318 = ssub.s32 32, 32
      %319 = vsyncadd [#allocation4], %s318
      %s321 = sshll.u32 [#allocation7], 4
      %s322 = int_to_ptr.vmem [resolvable:$true] %s321
      %324 = dma.vmem_to_hbm [thread:$0]  %s322, 32, %s3, [#allocation4]
    $region25: #{tpu_custom_call.1} parent=1 // pred_fallthru
      _
    // Predicated region
    $region26: #{tpu_custom_call.1} parent=1 // pred_check
      _
    $region27: #{tpu_custom_call.1} parent=1 // pred_check_branch
      %326 = sbr.rel (0) target = $region29
    $region28: #{tpu_custom_call.1} parent=1 // pred_region
      %327 = dma.done [#allocation4], 32
    $region29: #{tpu_custom_call.1} parent=1 // pred_fallthru
      _
    %328 = vsyncpa [#allocation3], 1
    %329 = vsyncpa [#allocation6], 1
    %330 = vsyncpa [#allocation4], 1

// kernel: tpu_custom_call.1
$region0: #{tpu_custom_call.1}
  #allocation0 [shape = 'u32[]', space=smem, size = 0x4, offset = 0x4, fixed_abs, tag = 'smem constant byte address 0x4 - core index']
  #allocation1 [shape = 'u32[144,128]{1,0:T(1,128)}', space=vmem, size = 0x12000, scoped, tag = 'internal scratch']
  %s0 = inlined_call_operand.hbm [shape: f32[2,224], index: 0, kind: input, shape index: {}]
  %s1 = inlined_call_operand.vmem [shape: f32[1,32], index: 1, kind: input, shape index: {}]
  %s2 = inlined_call_operand.hbm [shape: f32[32,128], index: 2, kind: input, shape index: {}]
  %s3 = inlined_call_operand.hbm [shape: f32[2,128], index: 3, kind: output, shape index: {}]
  %s4 = sld [smem:[#allocation0]]
  $region30: #{tpu_custom_call.1} parent=0
    _
  %s6 = ssub.s32 1, %s4
  %s7 = scalar_select 0, %s6, %s4
  $region1: #{tpu_custom_call.1} parent=0
    #allocation2 [shape = 'u8[2048]{0}', space=vmem, size = 0x800, scoped, tag = 'input window, operand 0, single buffered']
    #allocation3 [shape = 's32[1]{0}', space=sflag, size = 0x4, scoped, tag = 'scoped memory for tpu_custom_call.1']
    #allocation4 [shape = 's32[1]{0}', space=sflag, size = 0x4, scoped, tag = 'scoped memory for tpu_custom_call.1']
    #allocation5 [shape = 'u8[16384]{0}', space=vmem, size = 0x4000, scoped, tag = 'input window, operand 2, single buffered']
    #allocation6 [shape = 's32[1]{0}', space=sflag, size = 0x4, scoped, tag = 'scoped memory for tpu_custom_call.1']
    #allocation7 [shape = 'u8[1024]{0}', space=vmem, size = 0x400, scoped, tag = 'output window, operand 0, single buffered']
    %8 = vsyncpa [#allocation3], 0
    %9 = vsyncpa [#allocation6], 0
    %10 = vsyncpa [#allocation4], 0
    // Predicated region
    $region2: #{tpu_custom_call.1} parent=1 // pred_check
      _
    $region3: #{tpu_custom_call.1} parent=1 // pred_check_branch
      %12 = sbr.rel (0) target = $region5
    $region4: #{tpu_custom_call.1} parent=1 // pred_region
      %s14 = ssub.s32 64, 64
      %15 = vsyncadd [#allocation3], %s14
      %s17 = sshll.u32 [#allocation2], 4
      %s18 = int_to_ptr.vmem [resolvable:$true] %s17
      %20 = dma.hbm_to_vmem [thread:$0]  %s0, 64, %s18, [#allocation3]
    $region5: #{tpu_custom_call.1} parent=1 // pred_fallthru
      _
    // Predicated region
    $region6: #{tpu_custom_call.1} parent=1 // pred_check
      _
    $region7: #{tpu_custom_call.1} parent=1 // pred_check_branch
      %22 = sbr.rel (0) target = $region9
    $region8: #{tpu_custom_call.1} parent=1 // pred_region
      _
    $region9: #{tpu_custom_call.1} parent=1 // pred_fallthru
      _
    // Predicated region
    $region10: #{tpu_custom_call.1} parent=1 // pred_check
      _
    $region11: #{tpu_custom_call.1} parent=1 // pred_check_branch
      %24 = sbr.rel (0) target = $region13
    $region12: #{tpu_custom_call.1} parent=1 // pred_region
      %s26 = ssub.s32 512, 512
      %27 = vsyncadd [#allocation6], %s26
      %s28 = sshll.u32 [#allocation5], 4
      %s29 = int_to_ptr.vmem [resolvable:$true] %s28
      %34 = dma.hbm_to_vmem [thread:$0]  %s2, 512, %s29, [#allocation6], 128, 128, 8
    $region13: #{tpu_custom_call.1} parent=1 // pred_fallthru
      _
    // Predicated region
    $region14: #{tpu_custom_call.1} parent=1 // pred_check
      _
    $region15: #{tpu_custom_call.1} parent=1 // pred_check_branch
      %36 = sbr.rel (0) target = $region17
    $region16: #{tpu_custom_call.1} parent=1 // pred_region
      %37 = dma.done [#allocation3], 64
    $region17: #{tpu_custom_call.1} parent=1 // pred_fallthru
      _
    // Predicated region
    $region18: #{tpu_custom_call.1} parent=1 // pred_check
      _
    $region19: #{tpu_custom_call.1} parent=1 // pred_check_branch
      %39 = sbr.rel (0) target = $region21
    $region20: #{tpu_custom_call.1} parent=1 // pred_region
      %40 = dma.done [#allocation6], 512
    $region21: #{tpu_custom_call.1} parent=1 // pred_fallthru
      _
    %v41 = vld [vmem:[%s1] sm:$0x1]
    %v42 = vld [vmem:[#allocation2] sm:$0x3]
    %v44 = vlaneseq
    %v45 = vshrl.u32 %v44, 7
    %v46 = vsub.s32 0, %v45
    %v47 = vrot.slane %v41, %v46
    %v49 = vmul.f32 %v42, %v47
    %vm50 = vcmask 254976
    %v51 = vsel %vm50, %v49, 0.0
    %52 = vadd.xlane.f32.xlu0 %v51
    %v53 = vpop.xlane.xlu0 %52
    %v55 = vunpack.c.l.s4 1983009808
    %v56 = vunpack.c.0.s8 %v55
    %v57 = vlaneseq
    %v58 = vshrl.u32 %v57, 7
    %v59 = vsub.s32 %v56, %v58
    %v60 = vrot.slane %v47, %v59
    %61 = vrot.lane.b32.xlu0 %v60, 32
    %v62 = vpop.permute.xlu0 %61
    %v64 = vmul.f32 %v42, %v62
    %v67 = vunpack.c.l.s4 1983009808
    %v68 = vunpack.c.0.s8 %v67
    %v69 = vlaneseq
    %v70 = vshrl.u32 %v69, 7
    %v71 = vsub.s32 %v68, %v70
    %v72 = vrot.slane %v64, %v71
    %73 = vrot.lane.b32.xlu0 %v72, 96
    %v74 = vpop.permute.xlu0 %73
    %v76 = vsel %vm50, %v74, 0.0
    %77 = vadd.xlane.f32.xlu0 %v76
    %v78 = vpop.xlane.xlu0 %77
    %79 = vrot.lane.b32.xlu0 %v60, 64
    %v80 = vpop.permute.xlu0 %79
    %v82 = vmul.f32 %v42, %v80
    %v85 = vunpack.c.l.s4 1983009808
    %v86 = vunpack.c.0.s8 %v85
    %v87 = vlaneseq
    %v88 = vshrl.u32 %v87, 7
    %v89 = vsub.s32 %v86, %v88
    %v90 = vrot.slane %v82, %v89
    %91 = vrot.lane.b32.xlu0 %v90, 64
    %v92 = vpop.permute.xlu0 %91
    %v94 = vsel %vm50, %v92, 0.0
    %95 = vadd.xlane.f32.xlu0 %v94
    %v96 = vpop.xlane.xlu0 %95
    %97 = vrot.lane.b32.xlu0 %v60, 96
    %v98 = vpop.permute.xlu0 %97
    %v100 = vmul.f32 %v42, %v98
    %v103 = vunpack.c.l.s4 1983009808
    %v104 = vunpack.c.0.s8 %v103
    %v105 = vlaneseq
    %v106 = vshrl.u32 %v105, 7
    %v107 = vsub.s32 %v104, %v106
    %v108 = vrot.slane %v100, %v107
    %109 = vrot.lane.b32.xlu0 %v108, 32
    %v110 = vpop.permute.xlu0 %109
    %v112 = vsel %vm50, %v110, 0.0
    %113 = vadd.xlane.f32.xlu0 %v112
    %v114 = vpop.xlane.xlu0 %113
    %v115 = vld [vmem:[#allocation2 + $0x2] sm:$0x3]
    %v116 = vmul.f32 %v115, %v47
    %v117 = vsel %vm50, %v116, 0.0
    %118 = vadd.xlane.f32.xlu0 %v117
    %v119 = vpop.xlane.xlu0 %118
    %v120 = vmul.f32 %v115, %v62
    %v123 = vunpack.c.l.s4 1983009808
    %v124 = vunpack.c.0.s8 %v123
    %v125 = vlaneseq
    %v126 = vshrl.u32 %v125, 7
    %v127 = vsub.s32 %v124, %v126
    %v128 = vrot.slane %v120, %v127
    %129 = vrot.lane.b32.xlu0 %v128, 96
    %v130 = vpop.permute.xlu0 %129
    %v132 = vsel %vm50, %v130, 0.0
    %133 = vadd.xlane.f32.xlu0 %v132
    %v134 = vpop.xlane.xlu0 %133
    %v135 = vmul.f32 %v115, %v80
    %v138 = vunpack.c.l.s4 1983009808
    %v139 = vunpack.c.0.s8 %v138
    %v140 = vlaneseq
    %v141 = vshrl.u32 %v140, 7
    %v142 = vsub.s32 %v139, %v141
    %v143 = vrot.slane %v135, %v142
    %144 = vrot.lane.b32.xlu0 %v143, 64
    %v145 = vpop.permute.xlu0 %144
    %v147 = vsel %vm50, %v145, 0.0
    %148 = vadd.xlane.f32.xlu0 %v147
    %v149 = vpop.xlane.xlu0 %148
    %v150 = vmax.f32 %v53, %v78
    %v151 = vmax.f32 %v150, %v96
    %v152 = vmax.f32 %v151, %v114
    %v153 = vmax.f32 %v152, %v119
    %v154 = vmax.f32 %v153, %v134
    %v155 = vmax.f32 %v154, %v149
    %v156 = vsub.f32 %v53, %v155
    %v157 = vmul.f32 %v156, 1.442695
    %v158 = vpow.pop %v157
    %v159 = vsub.f32 %v78, %v155
    %v160 = vmul.f32 %v159, 1.442695
    %v161 = vpow.pop %v160
    %v162 = vsub.f32 %v96, %v155
    %v163 = vmul.f32 %v162, 1.442695
    %v164 = vpow.pop %v163
    %v165 = vsub.f32 %v114, %v155
    %v166 = vmul.f32 %v165, 1.442695
    %v167 = vpow.pop %v166
    %v168 = vsub.f32 %v119, %v155
    %v169 = vmul.f32 %v168, 1.442695
    %v170 = vpow.pop %v169
    %v171 = vsub.f32 %v134, %v155
    %v172 = vmul.f32 %v171, 1.442695
    %v173 = vpow.pop %v172
    %v174 = vsub.f32 %v149, %v155
    %v175 = vmul.f32 %v174, 1.442695
    %v176 = vpow.pop %v175
    %v177 = vadd.f32 %v158, %v161
    %v178 = vadd.f32 %v177, %v164
    %v179 = vadd.f32 %v178, %v167
    %v180 = vadd.f32 %v179, %v170
    %v181 = vadd.f32 %v180, %v173
    %v182 = vadd.f32 %v181, %v176
    %v183 = vrcp.pop %v182
    %v184 = vmul.f32 %v158, %v183
    %v185 = vmul.f32 %v161, %v183
    %v186 = vmul.f32 %v164, %v183
    %v187 = vmul.f32 %v167, %v183
    %v188 = vmul.f32 %v170, %v183
    %v189 = vmul.f32 %v173, %v183
    %v190 = vmul.f32 %v176, %v183
    %v191 = vmul.f32 %v184, %v42
    %v192 = vadd.f32 %v191, 0.0
    %v195 = vunpack.c.l.s4 1983009808
    %v196 = vunpack.c.0.s8 %v195
    %v197 = vlaneseq
    %v198 = vshrl.u32 %v197, 7
    %v199 = vsub.s32 %v196, %v198
    %v200 = vrot.slane %v42, %v199
    %201 = vrot.lane.b32.xlu0 %v200, 96
    %v202 = vpop.permute.xlu0 %201
    %v204 = vmul.f32 %v185, %v202
    %v205 = vadd.f32 %v192, %v204
    %206 = vrot.lane.b32.xlu0 %v200, 64
    %v207 = vpop.permute.xlu0 %206
    %v209 = vmul.f32 %v186, %v207
    %v210 = vadd.f32 %v205, %v209
    %211 = vrot.lane.b32.xlu0 %v200, 32
    %v212 = vpop.permute.xlu0 %211
    %v214 = vmul.f32 %v187, %v212
    %v215 = vadd.f32 %v210, %v214
    %v216 = vmul.f32 %v188, %v115
    %v217 = vadd.f32 %v215, %v216
    %v220 = vunpack.c.l.s4 1983009808
    %v221 = vunpack.c.0.s8 %v220
    %v222 = vlaneseq
    %v223 = vshrl.u32 %v222, 7
    %v224 = vsub.s32 %v221, %v223
    %v225 = vrot.slane %v115, %v224
    %226 = vrot.lane.b32.xlu0 %v225, 96
    %v227 = vpop.permute.xlu0 %226
    %v229 = vmul.f32 %v189, %v227
    %v230 = vadd.f32 %v217, %v229
    %231 = vrot.lane.b32.xlu0 %v225, 64
    %v232 = vpop.permute.xlu0 %231
    %v234 = vmul.f32 %v190, %v232
    %v235 = vadd.f32 %v230, %v234
    %v236 = vld [vmem:[#allocation5] sm:$0xff]
    %v237 = vld [vmem:[#allocation5 + $0x8] sm:$0xff]
    %v238 = vld [vmem:[#allocation5 + $0x10] sm:$0xff]
    %v239 = vld [vmem:[#allocation5 + $0x18] sm:$0xff]
    %vm240 = vcmask 261120
    %v242 = vsel %vm240, %v235, 0
    %244 = vmatprep.subr.mxu0 0.0
    %245 = vmatpush1.msra.mxu0 %v236
    %246 = vmatprep.subr.mxu0 0.0
    %247 = vmatpush1.msra.mxu0 %v237
    %248 = vmatprep.subr.mxu0 0.0
    %249 = vmatpush1.msra.mxu0 %v238
    %250 = vmatprep.subr.mxu0 0.0
    %251 = vmatpush1.msra.mxu0 %v239
    %252 = vmatprep.subr.mxu0 0.0
    %253 = vmatpush1.msra.mxu0 0.0
    %254 = vmatprep.subr.mxu0 0.0
    %255 = vmatpush1.msra.mxu0 0.0
    %256 = vmatprep.subr.mxu0 0.0
    %257 = vmatpush1.msra.mxu0 0.0
    %258 = vmatprep.subr.mxu0 0.0
    %259 = vmatpush1.msra.mxu0 0.0
    %260 = vmatprep.subr.mxu0 0.0
    %261 = vmatpush1.msra.mxu0 0.0
    %262 = vmatprep.subr.mxu0 0.0
    %263 = vmatpush1.msra.mxu0 0.0
    %264 = vmatprep.subr.mxu0 0.0
    %265 = vmatpush1.msra.mxu0 0.0
    %266 = vmatprep.subr.mxu0 0.0
    %267 = vmatpush1.msra.mxu0 0.0
    %268 = vmatprep.subr.mxu0 0.0
    %269 = vmatpush1.msra.mxu0 0.0
    %270 = vmatprep.subr.mxu0 0.0
    %271 = vmatpush1.msra.mxu0 0.0
    %272 = vmatprep.subr.mxu0 0.0
    %273 = vmatpush1.msra.mxu0 0.0
    %274 = vmatprep.subr.mxu0 0.0
    %275 = vmatpush1.msra.mxu0 0.0
    %276 = vmatprep.subr.mxu0 0.0
    %277 = vmatpush1.msra.mxu0 0.0
    %278 = vmatprep.subr.mxu0 0.0
    %279 = vmatpush1.msra.mxu0 0.0
    %280 = vmatprep.subr.mxu0 0.0
    %281 = vmatpush1.msra.mxu0 0.0
    %282 = vmatprep.subr.mxu0 0.0
    %283 = vmatpush1.msra.mxu0 0.0
    %284 = vmatprep.subr.mxu0 0.0
    %285 = vmatpush1.msra.mxu0 0.0
    %286 = vmatprep.subr.mxu0 0.0
    %287 = vmatpush1.msra.mxu0 0.0
    %288 = vmatprep.subr.mxu0 0.0
    %289 = vmatpush1.msra.mxu0 0.0
    %290 = vmatprep.subr.mxu0 0.0
    %291 = vmatpush1.msra.mxu0 0.0
    %292 = vmatprep.subr.mxu0 0.0
    %293 = vmatpush1.msra.mxu0 0.0
    %294 = vmatprep.subr.mxu0 0.0
    %295 = vmatpush1.msra.mxu0 0.0
    %296 = vmatprep.subr.mxu0 0.0
    %297 = vmatpush1.msra.mxu0 0.0
    %298 = vmatprep.subr.mxu0 0.0
    %299 = vmatpush1.msra.mxu0 0.0
    %300 = vmatprep.subr.mxu0 0.0
    %301 = vmatpush1.msra.mxu0 0.0
    %302 = vmatprep.subr.mxu0 0.0
    %303 = vmatpush1.msra.mxu0 0.0
    %304 = vmatprep.subr.mxu0 0.0
    %305 = vmatpush1.msra.mxu0 0.0
    %306 = vmatprep.subr.mxu0 0.0
    %307 = vmatpush1.msra.mxu0 0.0
    %308 = vmatprep.mubr.f32.mxu0 0.0
    %309 = vmatmul.mubr.f32.gmra.mrb[0].mxu0 %v242
    %v310 = vpop.f32.mrb[0].mxu0
    %v311 = vadd.f32 0.0, %v310
    %v312 = vpop.f32.mrb[0].mxu0
    %313 = vdwg.mxu0
    %314 = vst [vmem:[#allocation7] sm:$0x3] %v311
    // Predicated region
    $region22: #{tpu_custom_call.1} parent=1 // pred_check
      _
    $region23: #{tpu_custom_call.1} parent=1 // pred_check_branch
      %316 = sbr.rel (0) target = $region25
    $region24: #{tpu_custom_call.1} parent=1 // pred_region
      %s318 = ssub.s32 32, 32
      %319 = vsyncadd [#allocation4], %s318
      %s321 = sshll.u32 [#allocation7], 4
      %s322 = int_to_ptr.vmem [resolvable:$true] %s321
      %324 = dma.vmem_to_hbm [thread:$0]  %s322, 32, %s3, [#allocation4]
    $region25: #{tpu_custom_call.1} parent=1 // pred_fallthru
      _
    // Predicated region
    $region26: #{tpu_custom_call.1} parent=1 // pred_check
      _
    $region27: #{tpu_custom_call.1} parent=1 // pred_check_branch
      %326 = sbr.rel (0) target = $region29
    $region28: #{tpu_custom_call.1} parent=1 // pred_region
      %327 = dma.done [#allocation4], 32
    $region29: #{tpu_custom_call.1} parent=1 // pred_fallthru
      _
    %328 = vsyncpa [#allocation3], 1
    %329 = vsyncpa [#allocation6], 1
    %330 = vsyncpa [#allocation4], 1

</llo_original>
